<compile_context>
chip_gen: v6e
topology: v6e:2x2x1
jax: 0.10.0
libtpu: 0.0.40
codegen_flags: <defaults>
</compile_context>

<pallas_src>
import functools

import numpy as np
import jax
import jax.numpy as jnp
from jax import lax
from jax.experimental import pallas as pl
from jax.experimental.pallas import tpu as pltpu


# ----------------------------------------------------------------------------
# exact (erf-based) GELU, matching torch.nn.functional.gelu's default.
# erf via Abramowitz & Stegun 7.1.26 (max abs err ~1.5e-7); the divide runs on
# the EUP (approx reciprocal) + one Newton step so the VALU stays free.
# ----------------------------------------------------------------------------
def _gelu_exact(x):
    a1, a2, a3, a4, a5 = 0.254829592, -0.284496736, 1.421413741, -1.453152027, 1.061405429
    p = 0.3275911
    z = x * np.float32(1.0 / np.sqrt(2.0))
    s = jnp.where(z < 0.0, -1.0, 1.0).astype(x.dtype)
    az = jnp.abs(z)
    denom = 1.0 + p * az
    t = pl.reciprocal(denom, approx=True)
    t = t * (2.0 - denom * t)                     # one Newton step -> ~f32 accurate
    poly = ((((a5 * t + a4) * t + a3) * t + a2) * t + a1) * t
    erf = s * (1.0 - poly * jnp.exp(-az * az))
    return 0.5 * x * (1.0 + erf)


def _pick_tile_m(M, block_m):
    tm = min(block_m, M)
    if tm >= M:
        return M
    for align in (256, 128, 8):                   # MXU-friendly row tiles
        if tm >= align:
            return (tm // align) * align
    return max(tm, 1)


# ----------------------------------------------------------------------------
# Kernel 1: M-tiled dense layer  y = x @ W + b        (used for fc0)
# ----------------------------------------------------------------------------
def _linear_kernel(x_ref, w_ref, b_ref, o_ref):
    y = jnp.dot(x_ref[...], w_ref[...], preferred_element_type=jnp.float32)
    o_ref[...] = (y + b_ref[...]).astype(o_ref.dtype)


def linear(x2d, w, b, *, block_m=512):
    M, K = x2d.shape
    K2, N = w.shape
    assert K == K2
    tm = _pick_tile_m(M, block_m)
    return pl.pallas_call(
        _linear_kernel,
        out_shape=jax.ShapeDtypeStruct((M, N), x2d.dtype),
        grid=(pl.cdiv(M, tm),),
        in_specs=[
            pl.BlockSpec((tm, K), lambda i: (i, 0)),
            pl.BlockSpec((K, N), lambda i: (0, 0)),
            pl.BlockSpec((1, N), lambda i: (0, 0)),
        ],
        out_specs=pl.BlockSpec((tm, N), lambda i: (i, 0)),
        compiler_params=pltpu.CompilerParams(dimension_semantics=("parallel",)),
    )(x2d, w, b.reshape(1, N))


# ----------------------------------------------------------------------------
# Kernel 2: fused projection head  y = (gelu(x @ W1 + b1)) @ W2 + b2
# (fc1 + gelu + fc2; the (M, 128) intermediate never leaves VMEM)
# Output stays (M, out_dim): out_dim is tiny so its HBM traffic is negligible;
# the head is dominated by the fc1 matmul + gelu, not the store side.
# ----------------------------------------------------------------------------
def _mlp_head_kernel(x_ref, w1_ref, b1_ref, w2_ref, b2_ref, o_ref):
    h = jnp.dot(x_ref[...], w1_ref[...], preferred_element_type=jnp.float32)
    h = _gelu_exact(h + b1_ref[...])
    y = jnp.dot(h, w2_ref[...], preferred_element_type=jnp.float32) + b2_ref[...]
    o_ref[...] = y.astype(o_ref.dtype)


def mlp_head(x2d, w1, b1, w2, b2, *, block_m=512):
    M, K = x2d.shape
    H = w1.shape[1]
    N = w2.shape[1]
    tm = _pick_tile_m(M, block_m)
    return pl.pallas_call(
        _mlp_head_kernel,
        out_shape=jax.ShapeDtypeStruct((M, N), x2d.dtype),
        grid=(pl.cdiv(M, tm),),
        in_specs=[
            pl.BlockSpec((tm, K), lambda i: (i, 0)),
            pl.BlockSpec((K, H), lambda i: (0, 0)),
            pl.BlockSpec((1, H), lambda i: (0, 0)),
            pl.BlockSpec((H, N), lambda i: (0, 0)),
            pl.BlockSpec((1, N), lambda i: (0, 0)),
        ],
        out_specs=pl.BlockSpec((tm, N), lambda i: (i, 0)),
        compiler_params=pltpu.CompilerParams(dimension_semantics=("parallel",)),
    )(x2d, w1, b1.reshape(1, H), w2, b2.reshape(1, N))


# ----------------------------------------------------------------------------
# Kernel 3: the fused stack of `depth` Fourier layers.
#
# Activation slab layout: (N, Bt*W) -- spatial on sublanes, (batch-block,
# channel) folded into lanes.  The slab lives in a VMEM scratch for the whole
# depth sweep (the depth grid axis is the inner, "arbitrary" axis), so only
# the first/last layer touch HBM for activations.  Per layer (all MXU):
#   Xcat = [Fr;Fi] @ h                       fused truncated rfft (one matmul)
#   Y    = Z @ [[Wr,Wi],[-Wi,Wr]]            ONE mode-batched (Bt,2W)x(2W,2W)
#   x1   = [Br|Bi] @ [Yr;Yi]                 fused irfft (one matmul, K = 2m)
#   x2   = h @ (I_Bt (x) Wp) + bp            1x1 conv skip, lane-dense layout
#   h    = gelu(x1 + x2)
# ----------------------------------------------------------------------------
def _fourier_stack_kernel(x_ref, fcat_ref, bcat_ref, mix_ref, wpbd_ref, bp_ref,
                          o_ref, slab_ref, *, s_len, pad, bt, width, depth):
    d = pl.program_id(1)
    f32 = jnp.float32
    m = fcat_ref.shape[0] // 2
    w = width

    # Layer 0: load fc0 activations into the resident slab and zero-pad the
    # extra spatial rows (replaces the wrapper-level F.pad / jnp.pad).
    @pl.when(d == 0)
    def _():
        if pad > 0:
            slab_ref[...] = jnp.zeros(slab_ref.shape, slab_ref.dtype)
        slab_ref[pl.ds(0, s_len), :] = x_ref[...].astype(slab_ref.dtype)

    h = slab_ref[...]                                             # (N, Bt*W)

    # --- spectral path -------------------------------------------------------
    xcat = jnp.dot(fcat_ref[...], h, preferred_element_type=f32)  # (2m, Bt*W)
    xr = xcat[:m].reshape(m, bt, w)
    xi = xcat[m:].reshape(m, bt, w)
    z = jnp.concatenate([xr, xi], axis=-1).astype(mix_ref.dtype)  # (m, Bt, 2W)
    y = lax.dot_general(z, mix_ref[0],
                        dimension_numbers=(((2,), (1,)), ((0,), (0,))),
                        preferred_element_type=f32)               # (m, Bt, 2W)
    ycat = jnp.concatenate([y[:, :, :w].reshape(m, bt * w),
                            y[:, :, w:].reshape(m, bt * w)], axis=0)   # (2m, Bt*W)
    x1 = jnp.dot(bcat_ref[...], ycat.astype(bcat_ref.dtype),
                 preferred_element_type=f32)                      # (N, Bt*W)

    # --- 1x1-conv skip path (block-diagonal weight keeps lanes dense) --------
    x2 = jnp.dot(h, wpbd_ref[0], preferred_element_type=f32) + bp_ref[0]

    hn = _gelu_exact(x1 + x2)

    @pl.when(d < depth - 1)
    def _():
        slab_ref[...] = hn.astype(slab_ref.dtype)

    @pl.when(d == depth - 1)
    def _():
        # crop back to the un-padded spatial length on the way out.
        o_ref[...] = hn[:s_len, :].astype(o_ref.dtype)


def _pick_block_b(B, width, block_b):
    if block_b is not None:
        assert B % block_b == 0, (B, block_b)
        return block_b
    # Largest batch block with bt*W <= 256 lanes (bounds the block-diagonal
    # skip FLOP inflation to <= 256/W) that keeps the slab lane-dense
    # (bt*W % 128 == 0) unless it already covers the whole batch; >=2 batch
    # blocks also feed both v7x TensorCores via the "parallel" axis.
    for cand in range(B, 0, -1):
        if B % cand:
            continue
        cw = cand * width
        if cw <= 256 and (cw % 128 == 0 or cand == B):
            return cand
    return B


def fourier_stack(h2, Fcat, Bcat, Wr, Wi, Wp, bp, *, B, width, s_len, padding,
                  block_b=None, compute_dtype=jnp.float32, vmem_limit_bytes=None):
    """h2: (s, B*W) lane-dense slab (unpadded).  Returns (s, B*W)."""
    s, BW = h2.shape
    assert s == s_len and BW == B * width
    depth, m = Wr.shape[0], Wr.shape[1]
    N = s_len + padding

    bt = _pick_block_b(B, width, block_b)
    btw = bt * width

    # stacked-real mixing weight  [[Wr, Wi], [-Wi, Wr]] : (depth, m, 2W, 2W)
    mix = jnp.concatenate(
        [jnp.concatenate([Wr, Wi], axis=-1),
         jnp.concatenate([-Wi, Wr], axis=-1)], axis=-2)
    # block-diagonal 1x1-conv weight  I_bt (x) Wp : (depth, bt*W, bt*W)
    eye = jnp.eye(bt, dtype=Wp.dtype)
    wp_bd = jnp.einsum("ab,dio->daibo", eye, Wp).reshape(depth, btw, btw)
    bp_bd = jnp.tile(bp, (1, bt)).reshape(depth, 1, btw)

    wdt = compute_dtype
    kernel = functools.partial(_fourier_stack_kernel, s_len=s_len, pad=padding,
                               bt=bt, width=width, depth=depth)
    cparams = dict(dimension_semantics=("parallel", "arbitrary"))
    if vmem_limit_bytes is not None:
        cparams["vmem_limit_bytes"] = vmem_limit_bytes

    return pl.pallas_call(
        kernel,
        out_shape=jax.ShapeDtypeStruct((s_len, B * width), h2.dtype),
        grid=(B // bt, depth),
        in_specs=[
            pl.BlockSpec((s_len, btw), lambda b, d: (0, b)),           # fc0 acts
            pl.BlockSpec((2 * m, N), lambda b, d: (0, 0)),             # [Fr; Fi]
            pl.BlockSpec((N, 2 * m), lambda b, d: (0, 0)),             # [Br | Bi]
            pl.BlockSpec((1, m, 2 * width, 2 * width),
                         lambda b, d: (d, 0, 0, 0)),                   # mixing
            pl.BlockSpec((1, btw, btw), lambda b, d: (d, 0, 0)),       # I (x) Wp
            pl.BlockSpec((1, 1, btw), lambda b, d: (d, 0, 0)),         # tiled bias
        ],
        out_specs=pl.BlockSpec((s_len, btw), lambda b, d: (0, b)),
        scratch_shapes=[pltpu.VMEM((N, btw), wdt)],                    # resident slab
        compiler_params=pltpu.CompilerParams(**cparams),
    )(h2.astype(wdt), Fcat.astype(wdt), Bcat.astype(wdt),
      mix.astype(wdt), wp_bd.astype(wdt), bp_bd.astype(jnp.float32))


# ----------------------------------------------------------------------------
# DFT matrices reproducing torch.fft.rfft / torch.fft.irfft(n=N) restricted to
# the first `modes` bins (imag part of DC/Nyquist bins ignored, as irfft does).
# ----------------------------------------------------------------------------
def dft_matrices(N, modes, dtype=jnp.float32):
    n = np.arange(N)
    k = np.arange(modes)
    ang = 2.0 * np.pi * np.outer(k, n) / N            # (modes, N)
    Fr = np.cos(ang)
    Fi = -np.sin(ang)

    c = np.where(k == 0, 1.0, 2.0)
    if N % 2 == 0:
        c = np.where(k == N // 2, 1.0, c)
    c = c / N
    angT = 2.0 * np.pi * np.outer(n, k) / N           # (N, modes)
    Br = np.cos(angT) * c[None, :]
    Bi = -np.sin(angT) * c[None, :]
    zero_imag = (k == 0)
    if N % 2 == 0:
        zero_imag = zero_imag | (k == N // 2)
    Bi = np.where(zero_imag[None, :], 0.0, Bi)
    return (jnp.asarray(Fr, dtype), jnp.asarray(Fi, dtype),
            jnp.asarray(Br, dtype), jnp.asarray(Bi, dtype))


# ----------------------------------------------------------------------------
# parameter init (deterministic, PyTorch-style shapes/scales)
# ----------------------------------------------------------------------------
def init_params(key, in_dim, out_dim, steps, modes, width, depth):
    def linear_init(k, fan_in, fan_out):
        k1, k2 = jax.random.split(k)
        bound = 1.0 / np.sqrt(fan_in)
        w = jax.random.uniform(k1, (fan_in, fan_out), jnp.float32, -bound, bound)
        b = jax.random.uniform(k2, (fan_out,), jnp.float32, -bound, bound)
        return w, b

    k0, k1, k2, k3, k4, k5, k6 = jax.random.split(key, 7)
    params = {}
    params["fc0"] = linear_init(k0, steps * in_dim + 1, width)
    params["fc1"] = linear_init(k1, width, 128)
    params["fc2"] = linear_init(k2, 128, out_dim)

    scale = 1.0 / (width * width)
    params["Wr"] = scale * jax.random.uniform(k3, (depth, modes, width, width), jnp.float32)
    params["Wi"] = scale * jax.random.uniform(k4, (depth, modes, width, width), jnp.float32)
    bound = 1.0 / np.sqrt(width)
    params["Wp"] = jax.random.uniform(k5, (depth, width, width), jnp.float32, -bound, bound)
    params["bp"] = jax.random.uniform(k6, (depth, width), jnp.float32, -bound, bound)
    return params


# ----------------------------------------------------------------------------
# forward pass
# ----------------------------------------------------------------------------
def fno1d_forward(x, grid, params, *, modes, padding, block_b=None, block_m=512,
                  use_bf16=False, vmem_limit_bytes=None):
    B, s, _ = x.shape
    xg = jnp.concatenate([x, grid], axis=-1)                    # (B, s, steps*in_dim+1)

    w0, b0 = params["fc0"]
    h = linear(xg.reshape(B * s, -1), w0, b0, block_m=block_m)  # (B*s, width)
    width = h.shape[-1]

    N = s + padding
    Fr, Fi, Br, Bi = dft_matrices(N, modes, jnp.float32)
    Fcat = jnp.concatenate([Fr, Fi], axis=0)                    # (2m, N)
    Bcat = jnp.concatenate([Br, Bi], axis=1)                    # (N, 2m)

    # lane-dense slab layout (s, B*W); padding rows are created inside the
    # Fourier kernel and the crop back to s rows happens there too.
    # TODO(synk): the two transposes below are still XLA-side HBM round trips
    # of the activation; folding them into fc0 / the head would need a
    # lane-splitting layout that relayouts poorly for width < 128.
    h2 = jnp.transpose(h.reshape(B, s, width), (1, 0, 2)).reshape(s, B * width)

    cdt = jnp.bfloat16 if use_bf16 else jnp.float32
    h2 = fourier_stack(h2, Fcat, Bcat, params["Wr"], params["Wi"],
                       params["Wp"], params["bp"], B=B, width=width, s_len=s,
                       padding=padding, block_b=block_b, compute_dtype=cdt,
                       vmem_limit_bytes=vmem_limit_bytes)

    h = jnp.transpose(h2.reshape(s, B, width), (1, 0, 2)).reshape(B * s, width)

    w1, b1 = params["fc1"]
    w2, b2 = params["fc2"]
    y = mlp_head(h, w1, b1, w2, b2, block_m=block_m)
    return y.reshape(B, s, -1)


if __name__ == "__main__":
    # small, self-consistent shapes: modes <= (s+padding)//2 + 1
    B, s = 8, 16
    in_dim, out_dim, steps = 3, 1, 1
    modes, width, depth, padding = 4, 32, 4, 2

    key = jax.random.PRNGKey(0)
    kp, kx = jax.random.split(key)
    params = init_params(kp, in_dim, out_dim, steps, modes, width, depth)

    x = jax.random.normal(kx, (B, s, steps * in_dim), jnp.float32)
    grid = jnp.tile(jnp.linspace(0.0, 1.0, s, dtype=jnp.float32)[None, :, None],
                    (B, 1, 1))                                  # (B, s, 1)

    out = fno1d_forward(x, grid, params, modes=modes, padding=padding)
    out = jax.block_until_ready(out)
    assert out.shape == (B, s, out_dim), out.shape
    assert bool(jnp.all(jnp.isfinite(out)))
    print("KERNEL_OK")
</pallas_src>

<mosaic_0001>
module attributes {stable_mosaic.version = 11 : i64} {
  func.func @_linear_kernel(%arg0: i32, %arg1: memref<128x4xf32, #tpu.memory_space<vmem>>, %arg2: memref<4x32xf32, #tpu.memory_space<vmem>>, %arg3: memref<1x32xf32, #tpu.memory_space<vmem>>, %arg4: memref<128x32xf32, #tpu.memory_space<vmem>>) attributes {dimension_semantics = [#tpu.dimension_semantics<parallel>], iteration_bounds = array<i64: 1>, scalar_prefetch = 0 : i64, scratch_operands = 0 : i64, tpu.core_type = #tpu.core_type<tc>, window_params = [{transform_indices = @transform_0, window_bounds = array<i64: 128, 4>}, {pipeline_mode = #tpu.pipeline_mode<synchronous>, transform_indices = @transform_1, window_bounds = array<i64: 4, 32>}, {pipeline_mode = #tpu.pipeline_mode<synchronous>, transform_indices = @transform_2, window_bounds = array<i64: 1, 32>}, {transform_indices = @transform_3, window_bounds = array<i64: 128, 32>}]} {
    %c0 = arith.constant 0 : index
    %c0_0 = arith.constant 0 : index
    %0 = vector.load %arg1[%c0, %c0_0] : memref<128x4xf32, #tpu.memory_space<vmem>>, vector<128x4xf32>
    %c0_1 = arith.constant 0 : index
    %c0_2 = arith.constant 0 : index
    %1 = vector.load %arg2[%c0_1, %c0_2] : memref<4x32xf32, #tpu.memory_space<vmem>>, vector<4x32xf32>
    %cst = arith.constant dense<0.000000e+00> : vector<128x32xf32>
    %2 = tpu.matmul %0, %1, %cst {dimension_numbers = #tpu.dot_dimension_numbers<[1], [0], [0], [1], [0, 0, 1, 1], [], []>} : vector<128x4xf32>, vector<4x32xf32>, vector<128x32xf32> -> vector<128x32xf32>
    %c0_3 = arith.constant 0 : index
    %c0_4 = arith.constant 0 : index
    %3 = vector.load %arg3[%c0_3, %c0_4] : memref<1x32xf32, #tpu.memory_space<vmem>>, vector<1x32xf32>
    %4 = vector.broadcast %3 : vector<1x32xf32> to vector<128x32xf32>
    %5 = arith.addf %2, %4 : vector<128x32xf32>
    %c0_5 = arith.constant 0 : index
    %c0_6 = arith.constant 0 : index
    %6 = vector.load %arg4[%c0_5, %c0_6] : memref<128x32xf32, #tpu.memory_space<vmem>>, vector<128x32xf32>
    tpu.vector_store %arg4[%c0_5, %c0_6], %5 {strides = array<i32>} : memref<128x32xf32, #tpu.memory_space<vmem>>, vector<128x32xf32>,
    return
  }
  func.func @transform_0(%arg0: i32) -> (i32, i32) {
    %c0_i32 = arith.constant 0 : i32
    %c0_i32_0 = arith.constant 0 : i32
    return %arg0, %c0_i32 : i32, i32
  }
  func.func @transform_1(%arg0: i32) -> (i32, i32) {
    %c0_i32 = arith.constant 0 : i32
    %c0_i32_0 = arith.constant 0 : i32
    %c0_i32_1 = arith.constant 0 : i32
    return %c0_i32, %c0_i32_0 : i32, i32
  }
  func.func @transform_2(%arg0: i32) -> (i32, i32) {
    %c0_i32 = arith.constant 0 : i32
    %c0_i32_0 = arith.constant 0 : i32
    %c0_i32_1 = arith.constant 0 : i32
    return %c0_i32, %c0_i32_0 : i32, i32
  }
  func.func @transform_3(%arg0: i32) -> (i32, i32) {
    %c0_i32 = arith.constant 0 : i32
    %c0_i32_0 = arith.constant 0 : i32
    return %arg0, %c0_i32 : i32, i32
  }
}

</mosaic_0001>

<llo_original>
// kernel: tpu_custom_call.1
$region0: #{tpu_custom_call.1}
  #allocation0 [shape = 'u32[]', space=smem, size = 0x4, offset = 0x4, fixed_abs, tag = 'smem constant byte address 0x4 - core index']
  #allocation1 [shape = 'u32[144,128]{1,0:T(1,128)}', space=vmem, size = 0x12000, scoped, tag = 'internal scratch']
  %s0 = inlined_call_operand.vmem [shape: f32[128,4], index: 0, kind: input, shape index: {}]
  %s1 = inlined_call_operand.vmem [shape: f32[4,32], index: 1, kind: input, shape index: {}]
  %s2 = inlined_call_operand.vmem [shape: f32[1,32], index: 2, kind: input, shape index: {}]
  %s3 = inlined_call_operand.vmem [shape: f32[128,32], index: 3, kind: output, shape index: {}]
  %s4 = sld [smem:[#allocation0]]
  $region22: #{tpu_custom_call.1} parent=0
    _
  %s6 = ssub.s32 1, %s4
  %s7 = scalar_select 0, %s6, %s4
  // Predicated region
  $region2: #{tpu_custom_call.1} parent=0 // pred_check
    _
  $region3: #{tpu_custom_call.1} parent=0 // pred_check_branch
    %9 = sbr.rel (0) target = $region5
  $region4: #{tpu_custom_call.1} parent=0 // pred_region
    _
  $region5: #{tpu_custom_call.1} parent=0 // pred_fallthru
    _
  // Predicated region
  $region6: #{tpu_custom_call.1} parent=0 // pred_check
    _
  $region7: #{tpu_custom_call.1} parent=0 // pred_check_branch
    %11 = sbr.rel (0) target = $region9
  $region8: #{tpu_custom_call.1} parent=0 // pred_region
    _
  $region9: #{tpu_custom_call.1} parent=0 // pred_fallthru
    _
  // Predicated region
  $region10: #{tpu_custom_call.1} parent=0 // pred_check
    _
  $region11: #{tpu_custom_call.1} parent=0 // pred_check_branch
    %13 = sbr.rel (0) target = $region13
  $region12: #{tpu_custom_call.1} parent=0 // pred_region
    _
  $region13: #{tpu_custom_call.1} parent=0 // pred_fallthru
    _
  %v14 = vld [vmem:[%s0] sm:$0xff]
  %v15 = vld [vmem:[%s0 + $0x8] sm:$0xff]
  %v16 = vld [vmem:[%s0 + $0x10] sm:$0xff]
  %v17 = vld [vmem:[%s0 + $0x18] sm:$0xff]
  %v18 = vld [vmem:[%s0 + $0x20] sm:$0xff]
  %v19 = vld [vmem:[%s0 + $0x28] sm:$0xff]
  %v20 = vld [vmem:[%s0 + $0x30] sm:$0xff]
  %v21 = vld [vmem:[%s0 + $0x38] sm:$0xff]
  %v22 = vld [vmem:[%s0 + $0x40] sm:$0xff]
  %v23 = vld [vmem:[%s0 + $0x48] sm:$0xff]
  %v24 = vld [vmem:[%s0 + $0x50] sm:$0xff]
  %v25 = vld [vmem:[%s0 + $0x58] sm:$0xff]
  %v26 = vld [vmem:[%s0 + $0x60] sm:$0xff]
  %v27 = vld [vmem:[%s0 + $0x68] sm:$0xff]
  %v28 = vld [vmem:[%s0 + $0x70] sm:$0xff]
  %v29 = vld [vmem:[%s0 + $0x78] sm:$0xff]
  %v30 = vld [vmem:[%s1] sm:$0xf]
  %v31 = vld [vmem:[%s2] sm:$0x1]
  %v33 = vlaneseq
  %v34 = vshrl.u32 %v33, 7
  %v35 = vsub.s32 0, %v34
  %v36 = vrot.slane %v31, %v35
  %vm38 = vcmask 31744
  %v40 = vsel %vm38, %v14, 0
  %v43 = vsel %vm38, %v15, 0
  %v46 = vsel %vm38, %v16, 0
  %v49 = vsel %vm38, %v17, 0
  %v52 = vsel %vm38, %v18, 0
  %v55 = vsel %vm38, %v19, 0
  %v58 = vsel %vm38, %v20, 0
  %v61 = vsel %vm38, %v21, 0
  %v64 = vsel %vm38, %v22, 0
  %v67 = vsel %vm38, %v23, 0
  %v70 = vsel %vm38, %v24, 0
  %v73 = vsel %vm38, %v25, 0
  %v76 = vsel %vm38, %v26, 0
  %v79 = vsel %vm38, %v27, 0
  %v82 = vsel %vm38, %v28, 0
  %v85 = vsel %vm38, %v29, 0
  %vm87 = vcmask 1043456
  %v89 = vsel %vm87, %v30, 0
  %91 = vmatprep.subr.mxu0 0.0
  %92 = vmatpush1.msra.mxu0 0.0
  %93 = vmatprep.subr.mxu0 0.0
  %94 = vmatpush1.msra.mxu0 0.0
  %95 = vmatprep.subr.mxu0 0.0
  %96 = vmatpush1.msra.mxu0 0.0
  %97 = vmatprep.subr.mxu0 0.0
  %98 = vmatpush1.msra.mxu0 0.0
  %99 = vmatprep.subr.mxu0 0.0
  %100 = vmatpush1.msra.mxu0 0.0
  %101 = vmatprep.subr.mxu0 0.0
  %102 = vmatpush1.msra.mxu0 0.0
  %103 = vmatprep.subr.mxu0 0.0
  %104 = vmatpush1.msra.mxu0 0.0
  %105 = vmatprep.subr.mxu0 0.0
  %106 = vmatpush1.msra.mxu0 0.0
  %107 = vmatprep.subr.mxu0 0.0
  %108 = vmatpush1.msra.mxu0 0.0
  %109 = vmatprep.subr.mxu0 0.0
  %110 = vmatpush1.msra.mxu0 0.0
  %111 = vmatprep.subr.mxu0 0.0
  %112 = vmatpush1.msra.mxu0 0.0
  %113 = vmatprep.subr.mxu0 0.0
  %114 = vmatpush1.msra.mxu0 0.0
  %115 = vmatprep.subr.mxu0 0.0
  %116 = vmatpush1.msra.mxu0 0.0
  %117 = vmatprep.subr.mxu0 0.0
  %118 = vmatpush1.msra.mxu0 0.0
  %119 = vmatprep.subr.mxu0 0.0
  %120 = vmatpush1.msra.mxu0 0.0
  %121 = vmatprep.subr.mxu0 0.0
  %122 = vmatpush1.msra.mxu0 %v89
  %123 = vmatprep.subr.mxu0 0.0
  %124 = vmatpush2.msra.mxu0 0.0
  %125 = vmatprep.subr.mxu0 0.0
  %126 = vmatpush2.msra.mxu0 0.0
  %127 = vmatprep.subr.mxu0 0.0
  %128 = vmatpush2.msra.mxu0 0.0
  %129 = vmatprep.subr.mxu0 0.0
  %130 = vmatpush2.msra.mxu0 0.0
  %131 = vmatprep.subr.mxu0 0.0
  %132 = vmatpush2.msra.mxu0 0.0
  %133 = vmatprep.subr.mxu0 0.0
  %134 = vmatpush2.msra.mxu0 0.0
  %135 = vmatprep.subr.mxu0 0.0
  %136 = vmatpush2.msra.mxu0 0.0
  %137 = vmatprep.subr.mxu0 0.0
  %138 = vmatpush2.msra.mxu0 0.0
  %139 = vmatprep.subr.mxu0 0.0
  %140 = vmatpush2.msra.mxu0 0.0
  %141 = vmatprep.subr.mxu0 0.0
  %142 = vmatpush2.msra.mxu0 0.0
  %143 = vmatprep.subr.mxu0 0.0
  %144 = vmatpush2.msra.mxu0 0.0
  %145 = vmatprep.subr.mxu0 0.0
  %146 = vmatpush2.msra.mxu0 0.0
  %147 = vmatprep.subr.mxu0 0.0
  %148 = vmatpush2.msra.mxu0 0.0
  %149 = vmatprep.subr.mxu0 0.0
  %150 = vmatpush2.msra.mxu0 0.0
  %151 = vmatprep.subr.mxu0 0.0
  %152 = vmatpush2.msra.mxu0 0.0
  %153 = vmatprep.subr.mxu0 0.0
  %154 = vmatpush2.msra.mxu0 0.0
  %155 = vmatprep.mubr.f32.mxu0 0.0
  %156 = vmatmul.mubr.f32.gmra.mxu0 %v40
  %v157 = vpop.f32.mrf.mxu0
  %v158 = vadd.f32 %v36, %v157
  %v159 = vpop.f32.mrf.mxu0
  %160 = vmatprep.mubr.f32.mxu0 0.0
  %161 = vmatmul.mubr.f32.gmra.mxu0 %v43
  %v162 = vpop.f32.mrf.mxu0
  %v163 = vadd.f32 %v36, %v162
  %v164 = vpop.f32.mrf.mxu0
  %165 = vmatprep.mubr.f32.mxu0 0.0
  %166 = vmatmul.mubr.f32.gmra.mxu0 %v46
  %v167 = vpop.f32.mrf.mxu0
  %v168 = vadd.f32 %v36, %v167
  %v169 = vpop.f32.mrf.mxu0
  %170 = vmatprep.mubr.f32.mxu0 0.0
  %171 = vmatmul.mubr.f32.gmra.mxu0 %v49
  %v172 = vpop.f32.mrf.mxu0
  %v173 = vadd.f32 %v36, %v172
  %v174 = vpop.f32.mrf.mxu0
  %175 = vmatprep.mubr.f32.mxu0 0.0
  %176 = vmatmul.mubr.f32.gmra.mxu0 %v52
  %v177 = vpop.f32.mrf.mxu0
  %v178 = vadd.f32 %v36, %v177
  %v179 = vpop.f32.mrf.mxu0
  %180 = vmatprep.mubr.f32.mxu0 0.0
  %181 = vmatmul.mubr.f32.gmra.mxu0 %v55
  %v182 = vpop.f32.mrf.mxu0
  %v183 = vadd.f32 %v36, %v182
  %v184 = vpop.f32.mrf.mxu0
  %185 = vmatprep.mubr.f32.mxu0 0.0
  %186 = vmatmul.mubr.f32.gmra.mxu0 %v58
  %v187 = vpop.f32.mrf.mxu0
  %v188 = vadd.f32 %v36, %v187
  %v189 = vpop.f32.mrf.mxu0
  %190 = vmatprep.mubr.f32.mxu0 0.0
  %191 = vmatmul.mubr.f32.gmra.mxu0 %v61
  %v192 = vpop.f32.mrf.mxu0
  %v193 = vadd.f32 %v36, %v192
  %v194 = vpop.f32.mrf.mxu0
  %195 = vmatprep.mubr.f32.mxu0 0.0
  %196 = vmatmul.mubr.f32.gmra.mxu0 %v64
  %v197 = vpop.f32.mrf.mxu0
  %v198 = vadd.f32 %v36, %v197
  %v199 = vpop.f32.mrf.mxu0
  %200 = vmatprep.mubr.f32.mxu0 0.0
  %201 = vmatmul.mubr.f32.gmra.mxu0 %v67
  %v202 = vpop.f32.mrf.mxu0
  %v203 = vadd.f32 %v36, %v202
  %v204 = vpop.f32.mrf.mxu0
  %205 = vmatprep.mubr.f32.mxu0 0.0
  %206 = vmatmul.mubr.f32.gmra.mxu0 %v70
  %v207 = vpop.f32.mrf.mxu0
  %v208 = vadd.f32 %v36, %v207
  %v209 = vpop.f32.mrf.mxu0
  %210 = vmatprep.mubr.f32.mxu0 0.0
  %211 = vmatmul.mubr.f32.gmra.mxu0 %v73
  %v212 = vpop.f32.mrf.mxu0
  %v213 = vadd.f32 %v36, %v212
  %v214 = vpop.f32.mrf.mxu0
  %215 = vmatprep.mubr.f32.mxu0 0.0
  %216 = vmatmul.mubr.f32.gmra.mxu0 %v76
  %v217 = vpop.f32.mrf.mxu0
  %v218 = vadd.f32 %v36, %v217
  %v219 = vpop.f32.mrf.mxu0
  %220 = vmatprep.mubr.f32.mxu0 0.0
  %221 = vmatmul.mubr.f32.gmra.mxu0 %v79
  %v222 = vpop.f32.mrf.mxu0
  %v223 = vadd.f32 %v36, %v222
  %v224 = vpop.f32.mrf.mxu0
  %225 = vmatprep.mubr.f32.mxu0 0.0
  %226 = vmatmul.mubr.f32.gmra.mxu0 %v82
  %v227 = vpop.f32.mrf.mxu0
  %v228 = vadd.f32 %v36, %v227
  %v229 = vpop.f32.mrf.mxu0
  %230 = vmatprep.mubr.f32.mxu0 0.0
  %231 = vmatmul.mubr.f32.gmra.mxu0 %v85
  %v232 = vpop.f32.mrf.mxu0
  %v233 = vadd.f32 %v36, %v232
  %v234 = vpop.f32.mrf.mxu0
  %235 = vdwg.mxu0
  %vm236 = vcmask 261120
  %237 = vst.msk [vmem:[%s3] sm:$0xff] %vm236, %v158
  %238 = vst.msk [vmem:[%s3 + $0x8] sm:$0xff] %vm236, %v163
  %239 = vst.msk [vmem:[%s3 + $0x10] sm:$0xff] %vm236, %v168
  %240 = vst.msk [vmem:[%s3 + $0x18] sm:$0xff] %vm236, %v173
  %241 = vst.msk [vmem:[%s3 + $0x20] sm:$0xff] %vm236, %v178
  %242 = vst.msk [vmem:[%s3 + $0x28] sm:$0xff] %vm236, %v183
  %243 = vst.msk [vmem:[%s3 + $0x30] sm:$0xff] %vm236, %v188
  %244 = vst.msk [vmem:[%s3 + $0x38] sm:$0xff] %vm236, %v193
  %245 = vst.msk [vmem:[%s3 + $0x40] sm:$0xff] %vm236, %v198
  %246 = vst.msk [vmem:[%s3 + $0x48] sm:$0xff] %vm236, %v203
  %247 = vst.msk [vmem:[%s3 + $0x50] sm:$0xff] %vm236, %v208
  %248 = vst.msk [vmem:[%s3 + $0x58] sm:$0xff] %vm236, %v213
  %249 = vst.msk [vmem:[%s3 + $0x60] sm:$0xff] %vm236, %v218
  %250 = vst.msk [vmem:[%s3 + $0x68] sm:$0xff] %vm236, %v223
  %251 = vst.msk [vmem:[%s3 + $0x70] sm:$0xff] %vm236, %v228
  %252 = vst.msk [vmem:[%s3 + $0x78] sm:$0xff] %vm236, %v233
  // Predicated region
  $region14: #{tpu_custom_call.1} parent=0 // pred_check
    _
  $region15: #{tpu_custom_call.1} parent=0 // pred_check_branch
    %254 = sbr.rel (0) target = $region17
  $region16: #{tpu_custom_call.1} parent=0 // pred_region
    _
  $region17: #{tpu_custom_call.1} parent=0 // pred_fallthru
    _
  // Predicated region
  $region18: #{tpu_custom_call.1} parent=0 // pred_check
    _
  $region19: #{tpu_custom_call.1} parent=0 // pred_check_branch
    %256 = sbr.rel (0) target = $region21
  $region20: #{tpu_custom_call.1} parent=0 // pred_region
    _
  $region21: #{tpu_custom_call.1} parent=0 // pred_fallthru
    _

</llo_original>
